<compile_context>
chip_gen: v6e
topology: v6e:2x2x1
jax: 0.10.0
libtpu: 0.0.40
codegen_flags: <defaults>
</compile_context>

<pallas_src>
import jax
import jax.numpy as jnp
from jax import lax
from jax.experimental import pallas as pl
from jax.experimental.pallas import tpu as pltpu


_NEG_PAD = -1e30  # finite "minus infinity" for padded vocab columns (no inf-inf NaNs)


def _cdiv(a, b):
    return -(-a // b)


def _round_up(a, b):
    return _cdiv(a, b) * b


def _vmem_budget_bytes():
    """~75% of per-core VMEM: ~96 MiB on 128 MiB parts (v5e/v6e), ~48 MiB on v7x."""
    try:
        cap = int(pltpu.get_tpu_info().vmem_capacity_bytes)
    except Exception:
        cap = 64 << 20  # conservative (v7x-sized) fallback
    return int(min(cap * 3 // 4, 104 << 20))


def _footprint_bytes(tm, tv, D, x_isz, w_isz, out_isz):
    """Per-step VMEM footprint: double-buffered operands + f32 logits temp."""
    return (2 * tm * D * x_isz        # activation row tile
            + 2 * tv * D * w_isz      # weight vocab tile
            + 2 * tv * 4              # bias vocab tile
            + 2 * tm * tv * out_isz   # output tile
            + tm * tv * 4             # f32 logits intermediate
            + 4 * tm * 4              # m / l scratch
            + (2 << 20))              # slack for Mosaic internal scratch


def _choose_row_tile(N, desired):
    """Row tile: multiple of 16 (bf16 sublanes), large, minimal padding,
    and >= 2 tiles when N is big enough that v7x megacore matters."""
    desired = max(16, _round_up(desired, 16))
    n_row = max(1, _cdiv(N, desired))
    if n_row == 1 and N >= 512:
        n_row = 2  # keep both v7x TensorCores busy on the 'parallel' row axis
    tm = _round_up(_cdiv(N, n_row), 16)
    # Prefer an exact divisor of N (Np == N => no post-kernel slice copy of the
    # (N, V) output) when one exists close to the chosen tile size.
    if N % 16 == 0 and N % tm != 0:
        for t in range(tm, max(16, (3 * tm) // 4) - 1, -16):
            if N % t == 0:
                return t
    return tm


def _auto_tiles(N, D, V, x_isz, w_isz, out_isz, budget):
    """Pick (tm, tv): biggest row tiles that fit the VMEM budget.

    Weight HBM traffic scales as 2 * (N/tm) * V * D * 2B, so large tm is the
    main lever; tv in multiples of 256 for the 2x256^2 MXU on v6e/v7x."""
    v_full = _round_up(V, 128)
    for tm_d, tv_d in ((2048, 1024), (1024, 1024), (1024, 512), (512, 512),
                       (512, 256), (256, 256), (256, 128), (128, 128)):
        tv = min(tv_d, v_full)
        tm = _choose_row_tile(N, tm_d)
        if _footprint_bytes(tm, tv, D, x_isz, w_isz, out_isz) <= (budget * 17) // 20:
            return tm, tv
    return _choose_row_tile(N, 128), min(128, v_full)


def unembedding_kernel(x_ref, w_ref, b_ref, o_ref, m_ref, l_ref):
    """Grid = (row_tiles, phase, vocab_tiles).

    phase 0: online logsumexp accumulation over vocab tiles (scratch m/l);
             at the last vocab tile, m_ref is overwritten with m + log(l).
    phase 1: recompute the logits tile, subtract lse, write log-probs.
    """
    p = pl.program_id(1)
    j = pl.program_id(2)

    @pl.when(jnp.logical_and(p == 0, j == 0))
    def _init():
        m_ref[...] = jnp.full_like(m_ref, -jnp.inf)
        l_ref[...] = jnp.zeros_like(l_ref)

    # (tm, tv) f32 logits tile: x (tm, D) bf16 contracted with W (tv, D) bf16
    # along D == x @ W^T, accumulated in f32 on the MXU.  Bias tile is f32.
    logits = lax.dot_general(
        x_ref[...], w_ref[...],
        dimension_numbers=(((1,), (1,)), ((), ())),
        preferred_element_type=jnp.float32,
    ) + b_ref[...]

    @pl.when(p == 0)
    def _accumulate():
        m_prev = m_ref[...]
        m_new = jnp.maximum(m_prev, jnp.max(logits, axis=-1, keepdims=True))
        alpha = jnp.exp(m_prev - m_new)
        l_new = alpha * l_ref[...] + jnp.sum(
            jnp.exp(logits - m_new), axis=-1, keepdims=True)
        l_ref[...] = l_new
        m_ref[...] = m_new

        @pl.when(j == pl.num_programs(2) - 1)
        def _finalize():
            # Hoist lse = m + log(l) out of the phase-1 loop (runs once per row
            # tile instead of once per (row tile, vocab tile)).
            m_ref[...] = m_new + jnp.log(l_new)

    @pl.when(p == 1)
    def _write():
        o_ref[...] = (logits - m_ref[...]).astype(o_ref.dtype)


def prepare_unembedding_params(weight, bias, *, tv, compute_dtype=jnp.bfloat16):
    """Cast + pad the static unembedding weight/bias once.

    NOTE: hoist this call out of the per-step function in a real model -- the
    weight is static, and re-casting/padding the full (V, D) f32 weight every
    call costs as much HBM traffic as the kernel itself for large vocabularies.

    weight: (V, D) torch nn.Linear layout; bias: (V,).
    Returns (w (Vp, D) compute_dtype, bias (1, Vp) f32) with Vp = round_up(V, tv).
    Padded vocab columns get bias = -1e30 so they never affect the max/logsumexp.
    """
    V, _ = weight.shape
    Vp = _round_up(V, tv)
    w, b = weight, bias
    if Vp != V:
        w = jnp.pad(w, ((0, Vp - V), (0, 0)))
        b = jnp.pad(b, (0, Vp - V), constant_values=_NEG_PAD)
    # Keep (V, D) layout -- the kernel contracts on D via dot_general(((1,),(1,)));
    # no host-side transpose needed.
    return w.astype(compute_dtype), b.astype(jnp.float32).reshape(1, Vp)


def unembedding_apply(x, w_p, b_p, *, vocab_size, tm, tv,
                      compute_dtype=jnp.bfloat16, out_dtype=None,
                      vmem_limit=None):
    """x: (B, S, D); w_p/b_p from prepare_unembedding_params (padded to tv).

    Returns (B, S, vocab_size) log-probabilities (LogSoftmax over vocab dim).
    """
    B, S, D = x.shape
    Vp, D_w = w_p.shape
    assert D == D_w, "weight must be (vocab, model_dim)"
    assert Vp % tv == 0, "prepared weight must be padded to a multiple of tv"
    V = vocab_size
    out_dtype = x.dtype if out_dtype is None else out_dtype

    N = B * S
    Np = _round_up(N, tm)
    x2 = x.reshape(N, D)
    if Np != N:
        x2 = jnp.pad(x2, ((0, Np - N), (0, 0)))
    x2 = x2.astype(compute_dtype)      # bf16 activations (f32 MXU accumulation)

    n_row = Np // tm
    n_voc = Vp // tv
    if vmem_limit is None:
        vmem_limit = _vmem_budget_bytes()

    out2 = pl.pallas_call(
        unembedding_kernel,
        out_shape=jax.ShapeDtypeStruct((Np, Vp), out_dtype),
        grid_spec=pltpu.PrefetchScalarGridSpec(
            num_scalar_prefetch=0,
            grid=(n_row, 2, n_voc),
            in_specs=[
                pl.BlockSpec((tm, D), lambda i, p, j: (i, 0)),   # activation rows
                pl.BlockSpec((tv, D), lambda i, p, j: (j, 0)),   # weight vocab tile
                pl.BlockSpec((1, tv), lambda i, p, j: (0, j)),   # bias vocab tile
            ],
            # CORRECTNESS GUARD (reviewed): phase 0 parks the output on block
            # (i, 0) and never writes o_ref; Pallas only flushes an output
            # block when its block index changes, and the first index change
            # happens after phase 1 has (re)written block (i, 0).  If Pallas
            # writeback semantics ever flush untouched resident blocks, this
            # out_specs must be revisited.  Phase 1 walks lane-dense (tm, tv)
            # blocks across the vocab.
            out_specs=pl.BlockSpec((tm, tv), lambda i, p, j: (i, j * p)),
            scratch_shapes=[
                pltpu.VMEM((tm, 1), jnp.float32),   # running max -> final lse
                pltpu.VMEM((tm, 1), jnp.float32),   # running sum of exp
            ],
        ),
        compiler_params=pltpu.CompilerParams(
            dimension_semantics=("parallel", "arbitrary", "arbitrary"),
            vmem_limit_bytes=int(vmem_limit),
        ),
    )(x2, w_p, b_p)

    if Np != N or Vp != V:
        out2 = out2[:N, :V]
    return out2.reshape(B, S, V)


def unembedding_layer(x, weight, bias, *, tm=None, tv=None,
                      compute_dtype=jnp.bfloat16, out_dtype=None):
    """Convenience wrapper: nn.Linear(model_dim, vocab) + LogSoftmax(dim=-1).

    x: (B, S, D); weight: (V, D); bias: (V,).  tm/tv default to an
    auto-selection sized from the device's VMEM capacity.
    """
    B, S, D = x.shape
    V, D_w = weight.shape
    assert D == D_w, "weight must be (vocab, model_dim)"
    out_dtype = x.dtype if out_dtype is None else out_dtype

    N = B * S
    budget = _vmem_budget_bytes()
    x_isz = jnp.dtype(compute_dtype).itemsize
    auto_tm, auto_tv = _auto_tiles(N, D, V, x_isz, x_isz,
                                   jnp.dtype(out_dtype).itemsize, budget)
    tm = auto_tm if tm is None else min(_round_up(tm, 16), _round_up(N, 16))
    tv = auto_tv if tv is None else min(_round_up(tv, 128), _round_up(V, 128))

    # In a real model, hoist this prepare call outside the step function.
    w_p, b_p = prepare_unembedding_params(weight, bias, tv=tv,
                                          compute_dtype=compute_dtype)
    return unembedding_apply(x, w_p, b_p, vocab_size=V, tm=tm, tv=tv,
                             compute_dtype=compute_dtype, out_dtype=out_dtype,
                             vmem_limit=budget)


if __name__ == "__main__":
    key = jax.random.PRNGKey(0)
    k_x, k_w, k_b = jax.random.split(key, 3)

    # Small shapes; V deliberately NOT a multiple of 128 to exercise vocab
    # padding/masking.
    B, S, D, V = 2, 8, 32, 200

    x = jax.random.normal(k_x, (B, S, D), dtype=jnp.float32)
    bound = 1.0 / jnp.sqrt(D)
    weight = jax.random.uniform(k_w, (V, D), minval=-bound, maxval=bound,
                                dtype=jnp.float32)
    bias = jax.random.uniform(k_b, (V,), minval=-bound, maxval=bound,
                              dtype=jnp.float32)

    # Reference matching the kernel's compute path (bf16 inputs, f32 accumulate).
    xq = x.astype(jnp.bfloat16).astype(jnp.float32)
    wq = weight.astype(jnp.bfloat16).astype(jnp.float32)
    ref = jax.nn.log_softmax(xq @ wq.T + bias, axis=-1)

    # 1) Explicit tv=128 so the online logsumexp crosses multiple vocab tiles.
    out = jax.block_until_ready(unembedding_layer(x, weight, bias, tv=128))
    assert out.shape == (B, S, V)
    assert bool(jnp.all(jnp.isfinite(out)))
    assert jnp.allclose(out, ref, atol=2e-3, rtol=2e-3), \
        float(jnp.max(jnp.abs(out - ref)))

    # 2) Default auto-tiled path (single vocab tile at these shapes).
    out_auto = jax.block_until_ready(unembedding_layer(x, weight, bias))
    assert jnp.allclose(out_auto, ref, atol=2e-3, rtol=2e-3), \
        float(jnp.max(jnp.abs(out_auto - ref)))

    print("KERNEL_OK")
</pallas_src>

<mosaic_0001>
module attributes {stable_mosaic.version = 11 : i64} {
  func.func @unembedding_kernel(%arg0: i32, %arg1: i32, %arg2: i32, %arg3: memref<16x32xbf16, #tpu.memory_space<vmem>>, %arg4: memref<128x32xbf16, #tpu.memory_space<vmem>>, %arg5: memref<1x128xf32, #tpu.memory_space<vmem>>, %arg6: memref<16x128xf32, #tpu.memory_space<vmem>>, %arg7: memref<16x1xf32, #tpu.memory_space<vmem>>, %arg8: memref<16x1xf32, #tpu.memory_space<vmem>>) attributes {dimension_semantics = [#tpu.dimension_semantics<parallel>, #tpu.dimension_semantics<arbitrary>, #tpu.dimension_semantics<arbitrary>], iteration_bounds = array<i64: 1, 2, 2>, scalar_prefetch = 0 : i64, scratch_operands = 2 : i64, tpu.core_type = #tpu.core_type<tc>, window_params = [{transform_indices = @transform_0, window_bounds = array<i64: 16, 32>}, {transform_indices = @transform_1, window_bounds = array<i64: 128, 32>}, {transform_indices = @transform_2, window_bounds = array<i64: 1, 128>}, {transform_indices = @transform_3, window_bounds = array<i64: 16, 128>}]} {
    %c0_i32 = arith.constant 0 : i32
    %0 = arith.cmpi eq, %arg1, %c0_i32 : i32
    %c0_i32_0 = arith.constant 0 : i32
    %1 = arith.cmpi eq, %arg2, %c0_i32_0 : i32
    %2 = arith.andi %0, %1 : i1
    %3 = arith.extui %2 : i1 to i32
    %c0_i32_1 = arith.constant 0 : i32
    %4 = arith.cmpi ne, %3, %c0_i32_1 : i32
    scf.if %4 {
      %cst_10 = arith.constant 0xFF800000 : f32
      %17 = vector.broadcast %cst_10 : f32 to vector<16x1xf32>
      %c0_11 = arith.constant 0 : index
      %c0_12 = arith.constant 0 : index
      %18 = vector.load %arg7[%c0_11, %c0_12] : memref<16x1xf32, #tpu.memory_space<vmem>>, vector<16x1xf32>
      tpu.vector_store %arg7[%c0_11, %c0_12], %17 {strides = array<i32>} : memref<16x1xf32, #tpu.memory_space<vmem>>, vector<16x1xf32>,
      %cst_13 = arith.constant 0.000000e+00 : f32
      %19 = vector.broadcast %cst_13 : f32 to vector<16x1xf32>
      %c0_14 = arith.constant 0 : index
      %c0_15 = arith.constant 0 : index
      %20 = vector.load %arg8[%c0_14, %c0_15] : memref<16x1xf32, #tpu.memory_space<vmem>>, vector<16x1xf32>
      tpu.vector_store %arg8[%c0_14, %c0_15], %19 {strides = array<i32>} : memref<16x1xf32, #tpu.memory_space<vmem>>, vector<16x1xf32>,
    } else {
    }
    %c0 = arith.constant 0 : index
    %c0_2 = arith.constant 0 : index
    %5 = vector.load %arg3[%c0, %c0_2] : memref<16x32xbf16, #tpu.memory_space<vmem>>, vector<16x32xbf16>
    %c0_3 = arith.constant 0 : index
    %c0_4 = arith.constant 0 : index
    %6 = vector.load %arg4[%c0_3, %c0_4] : memref<128x32xbf16, #tpu.memory_space<vmem>>, vector<128x32xbf16>
    %cst = arith.constant dense<0.000000e+00> : vector<16x128xf32>
    %7 = tpu.matmul %5, %6, %cst {dimension_numbers = #tpu.dot_dimension_numbers<[1], [1], [0], [0], [0, 0, 1, 0], [], []>} : vector<16x32xbf16>, vector<128x32xbf16>, vector<16x128xf32> -> vector<16x128xf32>
    %c0_5 = arith.constant 0 : index
    %c0_6 = arith.constant 0 : index
    %8 = vector.load %arg5[%c0_5, %c0_6] : memref<1x128xf32, #tpu.memory_space<vmem>>, vector<1x128xf32>
    %9 = vector.broadcast %8 : vector<1x128xf32> to vector<16x128xf32>
    %10 = arith.addf %7, %9 : vector<16x128xf32>
    %c0_i32_7 = arith.constant 0 : i32
    %11 = arith.cmpi eq, %arg1, %c0_i32_7 : i32
    %12 = arith.extui %11 : i1 to i32
    %c0_i32_8 = arith.constant 0 : i32
    %13 = arith.cmpi ne, %12, %c0_i32_8 : i32
    scf.if %13 {
      %c0_10 = arith.constant 0 : index
      %c0_11 = arith.constant 0 : index
      %17 = vector.load %arg7[%c0_10, %c0_11] : memref<16x1xf32, #tpu.memory_space<vmem>>, vector<16x1xf32>
      %cst_12 = arith.constant dense<0xFF800000> : vector<16xf32>
      %18 = vector.multi_reduction <maximumf>, %10, %cst_12 [1] : vector<16x128xf32> to vector<16xf32>
      %19 = vector.shape_cast %18 : vector<16xf32> to vector<16x1xf32>
      %20 = arith.maximumf %17, %19 : vector<16x1xf32>
      %21 = arith.subf %17, %20 : vector<16x1xf32>
      %22 = math.exp %21 : vector<16x1xf32>
      %c0_13 = arith.constant 0 : index
      %c0_14 = arith.constant 0 : index
      %23 = vector.load %arg8[%c0_13, %c0_14] : memref<16x1xf32, #tpu.memory_space<vmem>>, vector<16x1xf32>
      %24 = arith.mulf %22, %23 : vector<16x1xf32>
      %25 = vector.broadcast %20 : vector<16x1xf32> to vector<16x128xf32>
      %26 = arith.subf %10, %25 : vector<16x128xf32>
      %27 = math.exp %26 : vector<16x128xf32>
      %cst_15 = arith.constant dense<0.000000e+00> : vector<16xf32>
      %28 = vector.multi_reduction <add>, %27, %cst_15 [1] : vector<16x128xf32> to vector<16xf32>
      %29 = vector.shape_cast %28 : vector<16xf32> to vector<16x1xf32>
      %30 = arith.addf %24, %29 : vector<16x1xf32>
      %c0_16 = arith.constant 0 : index
      %c0_17 = arith.constant 0 : index
      %31 = vector.load %arg8[%c0_16, %c0_17] : memref<16x1xf32, #tpu.memory_space<vmem>>, vector<16x1xf32>
      tpu.vector_store %arg8[%c0_16, %c0_17], %30 {strides = array<i32>} : memref<16x1xf32, #tpu.memory_space<vmem>>, vector<16x1xf32>,
      %c0_18 = arith.constant 0 : index
      %c0_19 = arith.constant 0 : index
      %32 = vector.load %arg7[%c0_18, %c0_19] : memref<16x1xf32, #tpu.memory_space<vmem>>, vector<16x1xf32>
      tpu.vector_store %arg7[%c0_18, %c0_19], %20 {strides = array<i32>} : memref<16x1xf32, #tpu.memory_space<vmem>>, vector<16x1xf32>,
      %c1_i32_20 = arith.constant 1 : i32
      %33 = arith.cmpi eq, %arg2, %c1_i32_20 : i32
      %34 = arith.extui %33 : i1 to i32
      %c0_i32_21 = arith.constant 0 : i32
      %35 = arith.cmpi ne, %34, %c0_i32_21 : i32
      scf.if %35 {
        %36 = math.log %30 : vector<16x1xf32>
        %37 = arith.addf %20, %36 : vector<16x1xf32>
        %c0_22 = arith.constant 0 : index
        %c0_23 = arith.constant 0 : index
        %38 = vector.load %arg7[%c0_22, %c0_23] : memref<16x1xf32, #tpu.memory_space<vmem>>, vector<16x1xf32>
        tpu.vector_store %arg7[%c0_22, %c0_23], %37 {strides = array<i32>} : memref<16x1xf32, #tpu.memory_space<vmem>>, vector<16x1xf32>,
      } else {
      }
    } else {
    }
    %c1_i32 = arith.constant 1 : i32
    %14 = arith.cmpi eq, %arg1, %c1_i32 : i32
    %15 = arith.extui %14 : i1 to i32
    %c0_i32_9 = arith.constant 0 : i32
    %16 = arith.cmpi ne, %15, %c0_i32_9 : i32
    scf.if %16 {
      %c0_10 = arith.constant 0 : index
      %c0_11 = arith.constant 0 : index
      %17 = vector.load %arg7[%c0_10, %c0_11] : memref<16x1xf32, #tpu.memory_space<vmem>>, vector<16x1xf32>
      %18 = vector.broadcast %17 : vector<16x1xf32> to vector<16x128xf32>
      %19 = arith.subf %10, %18 : vector<16x128xf32>
      %c0_12 = arith.constant 0 : index
      %c0_13 = arith.constant 0 : index
      %20 = vector.load %arg6[%c0_12, %c0_13] : memref<16x128xf32, #tpu.memory_space<vmem>>, vector<16x128xf32>
      tpu.vector_store %arg6[%c0_12, %c0_13], %19 {strides = array<i32>} : memref<16x128xf32, #tpu.memory_space<vmem>>, vector<16x128xf32>,
    } else {
    }
    return
  }
  func.func @transform_0(%arg0: i32, %arg1: i32, %arg2: i32) -> (i32, i32) {
    %c0_i32 = arith.constant 0 : i32
    %c0_i32_0 = arith.constant 0 : i32
    return %arg0, %c0_i32 : i32, i32
  }
  func.func @transform_1(%arg0: i32, %arg1: i32, %arg2: i32) -> (i32, i32) {
    %c0_i32 = arith.constant 0 : i32
    %c0_i32_0 = arith.constant 0 : i32
    return %arg2, %c0_i32 : i32, i32
  }
  func.func @transform_2(%arg0: i32, %arg1: i32, %arg2: i32) -> (i32, i32) {
    %c0_i32 = arith.constant 0 : i32
    %c0_i32_0 = arith.constant 0 : i32
    return %c0_i32, %arg2 : i32, i32
  }
  func.func @transform_3(%arg0: i32, %arg1: i32, %arg2: i32) -> (i32, i32) {
    %0 = arith.muli %arg2, %arg1 : i32
    %c0_i32 = arith.constant 0 : i32
    return %arg0, %0 : i32, i32
  }
}

</mosaic_0001>

<llo_original>
// kernel: tpu_custom_call.1
$region0: #{tpu_custom_call.1}
  #allocation0 [shape = 'u32[]', space=smem, size = 0x4, offset = 0x4, fixed_abs, tag = 'smem constant byte address 0x4 - core index']
  #allocation1 [shape = 'u32[144,128]{1,0:T(1,128)}', space=vmem, size = 0x12000, scoped, tag = 'internal scratch']
  #allocation2 [shape = 'f32[16,1]{1,0:T(8,128)}', space=vmem, size = 0x2000, scoped, tag = 'scratch operand']
  #allocation3 [shape = 'f32[16,1]{1,0:T(8,128)}', space=vmem, size = 0x2000, scoped, tag = 'scratch operand']
  %s0 = inlined_call_operand.vmem [shape: bf16[16,32], index: 0, kind: input, shape index: {}]
  %s1 = inlined_call_operand.vmem [shape: bf16[256,32], index: 1, kind: input, shape index: {}]
  %s2 = inlined_call_operand.vmem [shape: f32[1,256], index: 2, kind: input, shape index: {}]
  %s3 = inlined_call_operand.hbm [shape: f32[16,256], index: 3, kind: output, shape index: {}]
  %s4 = sld [smem:[#allocation0]]
  $region61: #{tpu_custom_call.1} parent=0
    _
  %s6 = ssub.s32 1, %s4
  %s7 = scalar_select 0, %s6, %s4
  $region1: #{tpu_custom_call.1} parent=0
    #allocation4 [shape = 'u8[16384]{0}', space=vmem, size = 0x4000, scoped, tag = 'output window, operand 0']
    #allocation5 [shape = 's32[2]{0}', space=sflag, size = 0x8, scoped, tag = 'scoped memory for tpu_custom_call.1']
    %8 = vsyncpa [#allocation5], 0
    %s9 = scalar_lea.sflag [#allocation5], 1
    %10 = vsyncpa %s9, 0
    loop: start=0, step=1, limit=6
    $region2: #{tpu_custom_call.1} parent=1 // loop_pre_header
      _
    $region3: #{tpu_custom_call.1} parent=1 // loop_header
      %s12 = sphi 0, %s16
      %p13 = scmp.ge.s32.totalorder %s12, 6
      %s19 = sphi 0, %s38
      %s20 = sphi 0, %s34
      %s21 = sphi 0, %s30
      %s22 = sphi 0, %s19
      %s23 = sphi 0, %s20
      %s24 = sphi 0, %s21
      %s25 = sphi 0, %s22
      %s26 = sphi 0, %s23
      %s27 = sphi 0, %s24
      %s41 = sphi 0, %s43
      %s44 = sphi 0, %s41
      %s45 = sphi 0, %s44
      %s61 = sphi 0, %s45
      %s67 = sphi 0, %s69
      %s70 = sphi 0, %s67
      %s71 = sphi 0, %s70
      %s87 = sphi 0, %s71
      %s93 = sphi 0, %s95
      %s96 = sphi 0, %s93
      %s97 = sphi 0, %s96
      %s113 = sphi 0, %s97
      %s123 = sphi 0, %s125
      %s126 = sphi 0, %s123
      %s127 = sphi 0, %s126
      %s143 = sphi 0, %s127
    $region4: #{tpu_custom_call.1} parent=1 // loop_header_branch
      %15 = sbr.rel (%p13) target = $region8
    $region5: #{tpu_custom_call.1} parent=1 // loop_body
      %s17 = ssub.s32 %s12, 1
      %s18 = ssub.s32 %s12, 2
      %s28 = sadd.s32 1, %s21
      %p29 = scmp.ge.s32.totalorder %s28, 2
      %s30 = scalar_select %p29, 0, %s28
      %s31 = sadd.s32 1, %s20
      %s32 = scalar_select %p29, %s31, %s20
      %p33 = scmp.ge.s32.totalorder %s32, 2
      %s34 = scalar_select %p33, 0, %s32
      %s35 = sadd.s32 1, %s19
      %s36 = scalar_select %p33, %s35, %s19
      %p37 = scmp.ge.s32.totalorder %s36, 1
      %s38 = scalar_select %p37, 0, %s36
      %s39 = ssub.s32 %s19, %s38
      %p40 = scmp.eq.s32.totalorder %s39, 0
      %s42 = sadd.s32 %s41, 1
      %s43 = scalar_select %p40, %s41, %s42
      %p46 = pneg %p40
      %p47 = scmp.eq.s32.totalorder %s12, 3
      %p48 = por %p46, %p47
      %p49 = scmp.ne.s32.totalorder %s41, %s44
      %p50 = scmp.eq.s32.totalorder %s12, 0
      %p51 = por %p49, %p50
      %p52 = scmp.ne.s32.totalorder %s41, %s44
      %p53 = scmp.eq.s32.totalorder %s17, 3
      %p54 = por %p52, %p53
      %p55 = scmp.ne.s32.totalorder %s44, %s45
      %p56 = scmp.eq.s32.totalorder %s17, 0
      %p57 = por %p55, %p56
      %p58 = scmp.ne.s32.totalorder %s44, %s45
      %p59 = scmp.eq.s32.totalorder %s18, 3
      %p60 = por %p58, %p59
      %p62 = scmp.ne.s32.totalorder %s45, %s61
      %p63 = scmp.eq.s32.totalorder %s18, 0
      %p64 = por %p62, %p63
      %s65 = ssub.s32 %s21, %s30
      %p66 = scmp.eq.s32.totalorder %s65, 0
      %s68 = sadd.s32 %s67, 1
      %s69 = scalar_select %p66, %s67, %s68
      %p72 = pneg %p66
      %p73 = scmp.eq.s32.totalorder %s12, 3
      %p74 = por %p72, %p73
      %p75 = scmp.ne.s32.totalorder %s67, %s70
      %p76 = scmp.eq.s32.totalorder %s12, 0
      %p77 = por %p75, %p76
      %p78 = scmp.ne.s32.totalorder %s67, %s70
      %p79 = scmp.eq.s32.totalorder %s17, 3
      %p80 = por %p78, %p79
      %p81 = scmp.ne.s32.totalorder %s70, %s71
      %p82 = scmp.eq.s32.totalorder %s17, 0
      %p83 = por %p81, %p82
      %p84 = scmp.ne.s32.totalorder %s70, %s71
      %p85 = scmp.eq.s32.totalorder %s18, 3
      %p86 = por %p84, %p85
      %p88 = scmp.ne.s32.totalorder %s71, %s87
      %p89 = scmp.eq.s32.totalorder %s18, 0
      %p90 = por %p88, %p89
      %s91 = ssub.s32 %s21, %s30
      %p92 = scmp.eq.s32.totalorder %s91, 0
      %s94 = sadd.s32 %s93, 1
      %s95 = scalar_select %p92, %s93, %s94
      %p98 = pneg %p92
      %p99 = scmp.eq.s32.totalorder %s12, 3
      %p100 = por %p98, %p99
      %p101 = scmp.ne.s32.totalorder %s93, %s96
      %p102 = scmp.eq.s32.totalorder %s12, 0
      %p103 = por %p101, %p102
      %p104 = scmp.ne.s32.totalorder %s93, %s96
      %p105 = scmp.eq.s32.totalorder %s17, 3
      %p106 = por %p104, %p105
      %p107 = scmp.ne.s32.totalorder %s96, %s97
      %p108 = scmp.eq.s32.totalorder %s17, 0
      %p109 = por %p107, %p108
      %p110 = scmp.ne.s32.totalorder %s96, %s97
      %p111 = scmp.eq.s32.totalorder %s18, 3
      %p112 = por %p110, %p111
      %p114 = scmp.ne.s32.totalorder %s97, %s113
      %p115 = scmp.eq.s32.totalorder %s18, 0
      %p116 = por %p114, %p115
      %s117 = smul.u32 %s21, %s20
      %s118 = smul.u32 %s30, %s34
      %s119 = ssub.s32 %s19, %s38
      %s120 = ssub.s32 %s117, %s118
      %s121 = sor.u32 %s119, %s120
      %p122 = scmp.eq.s32.totalorder %s121, 0
      %s124 = sadd.s32 %s123, 1
      %s125 = scalar_select %p122, %s123, %s124
      %p128 = pneg %p122
      %p129 = scmp.eq.s32.totalorder %s12, 3
      %p130 = por %p128, %p129
      %p131 = scmp.ne.s32.totalorder %s123, %s126
      %p132 = scmp.eq.s32.totalorder %s12, 0
      %p133 = por %p131, %p132
      %p134 = scmp.ne.s32.totalorder %s123, %s126
      %p135 = scmp.eq.s32.totalorder %s17, 3
      %p136 = por %p134, %p135
      %p137 = scmp.ne.s32.totalorder %s126, %s127
      %p138 = scmp.eq.s32.totalorder %s17, 0
      %p139 = por %p137, %p138
      %p140 = scmp.ne.s32.totalorder %s126, %s127
      %p141 = scmp.eq.s32.totalorder %s18, 3
      %p142 = por %p140, %p141
      %p144 = scmp.ne.s32.totalorder %s127, %s143
      %p145 = scmp.eq.s32.totalorder %s18, 0
      %p146 = por %p144, %p145
      %p147 = scmp.le.s32.totalorder 1, %s12
      %p148 = scmp.lt.s32.totalorder %s12, 5
      %p149 = pnand %p147, %p148
      %p150 = pneg %p149
      // Predicated region
      $region9: #{tpu_custom_call.1} parent=5 // pred_check
        _
      $region10: #{tpu_custom_call.1} parent=5 // pred_check_branch
        %152 = sbr.rel (%p149) target = $region12
      $region11: #{tpu_custom_call.1} parent=5 // pred_region
        %s153 = ssub.s32 %s12, 1
        // Predicated region
        $region13: #{tpu_custom_call.1} parent=11 // pred_check
          %p154 = pneg %p57
        $region14: #{tpu_custom_call.1} parent=11 // pred_check_branch
          %156 = sbr.rel (%p154) target = $region16
        $region15: #{tpu_custom_call.1} parent=11 // pred_region
          %s157 = smul.u32 2, %s22
          %p158 = scmp.lt.s32.totalorder %s157, 1
          %s159 = scalar_select %p158, %s157, 1
          %s160 = smul.addr %s159, 4
          %s161 = scalar_lea.vmem %s0, %s160
          %s162 = smul.u32 2, %s22
        $region16: #{tpu_custom_call.1} parent=11 // pred_fallthru
          _
      $region12: #{tpu_custom_call.1} parent=5 // pred_fallthru
        _
      %p163 = scmp.lt.s32.totalorder %s12, 4
      // Predicated region
      $region17: #{tpu_custom_call.1} parent=5 // pred_check
        %p164 = pneg %p163
      $region18: #{tpu_custom_call.1} parent=5 // pred_check_branch
        %166 = sbr.rel (%p164) target = $region20
      $region19: #{tpu_custom_call.1} parent=5 // pred_region
        // Predicated region
        $region21: #{tpu_custom_call.1} parent=19 // pred_check
          %p167 = pneg %p77
        $region22: #{tpu_custom_call.1} parent=19 // pred_check_branch
          %169 = sbr.rel (%p167) target = $region24
        $region23: #{tpu_custom_call.1} parent=19 // pred_region
          %s170 = smul.u32 16, %s21
          %p171 = scmp.lt.s32.totalorder %s170, 31
          %s172 = scalar_select %p171, %s170, 31
          %s173 = smul.addr %s172, 4
          %s174 = scalar_lea.vmem %s1, %s173
          %s175 = smul.u32 16, %s21
        $region24: #{tpu_custom_call.1} parent=19 // pred_fallthru
          _
        // Predicated region
        $region25: #{tpu_custom_call.1} parent=19 // pred_check
          %p176 = pneg %p103
        $region26: #{tpu_custom_call.1} parent=19 // pred_check_branch
          %178 = sbr.rel (%p176) target = $region28
        $region27: #{tpu_custom_call.1} parent=19 // pred_region
          %p179 = scmp.lt.s32.totalorder %s21, 1
          %s180 = scalar_select %p179, %s21, 1
          %s181 = scalar_lea.vmem %s2, %s180
        $region28: #{tpu_custom_call.1} parent=19 // pred_fallthru
          _
      $region20: #{tpu_custom_call.1} parent=5 // pred_fallthru
        _
      %p182 = scmp.le.s32.totalorder 1, %s12
      %p183 = scmp.lt.s32.totalorder %s12, 5
      %p184 = pnand %p182, %p183
      %p185 = pneg %p184
      // Predicated region
      $region29: #{tpu_custom_call.1} parent=5 // pred_check
        _
      $region30: #{tpu_custom_call.1} parent=5 // pred_check_branch
        %187 = sbr.rel (%p184) target = $region32
      $region31: #{tpu_custom_call.1} parent=5 // pred_region
        %s188 = ssub.s32 %s12, 1
        %s189 = smul.u32 2, %s22
        %p190 = scmp.lt.s32.totalorder %s189, 1
        %s191 = scalar_select %p190, %s189, 1
        %s192 = smul.addr %s191, 4
        %s193 = scalar_lea.vmem %s0, %s192
        %p194 = pneg %p57
        %p195 = pneg %p54
        %s196 = smul.u32 16, %s24
        %p197 = scmp.lt.s32.totalorder %s196, 31
        %s198 = scalar_select %p197, %s196, 31
        %s199 = smul.addr %s198, 4
        %s200 = scalar_lea.vmem %s1, %s199
        %p201 = pneg %p83
        %p202 = pneg %p80
        %p203 = scmp.lt.s32.totalorder %s24, 1
        %s204 = scalar_select %p203, %s24, 1
        %s205 = scalar_lea.vmem %s2, %s204
        %p206 = pneg %p109
        %p207 = pneg %p106
        %p208 = pneg %p139
        %p209 = pneg %p136
        %s210 = sand.u32 %s126, 1
        %s211 = scalar_lea.sflag [#allocation5], %s210
        %s212 = sand.u32 %s126, 1
        %s213 = smul.addr %s212, 16
        %s214 = scalar_lea.vmem [#allocation4], %s213
        %s215 = smul.u32 2, %s22
        %p216 = scmp.lt.s32.totalorder %s215, 1
        %s217 = scalar_select %p216, %s215, 1
        %s218 = smul.addr %s217, 4
        %s219 = scalar_lea.vmem %s0, %s218
        %s220 = smul.u32 2, %s22
        %s221 = smul.u32 16, %s24
        %p222 = scmp.lt.s32.totalorder %s221, 31
        %s223 = scalar_select %p222, %s221, 31
        %s224 = smul.addr %s223, 4
        %s225 = scalar_lea.vmem %s1, %s224
        %s226 = smul.u32 16, %s24
        %p227 = scmp.lt.s32.totalorder %s24, 1
        %s228 = scalar_select %p227, %s24, 1
        %s229 = scalar_lea.vmem %s2, %s228
        %s230 = smul.u32 %s24, %s23
        %s231 = smul.u32 2, %s22
        %p233 = scmp.eq.s32.totalorder %s23, 0
        %p234 = scmp.eq.s32.totalorder %s24, 0
        %p235 = pnand %p233, %p234
        %p236 = pneg %p235
        // Predicated region
        $region33: #{tpu_custom_call.1} parent=31 // pred_check
          _
        $region34: #{tpu_custom_call.1} parent=31 // pred_check_branch
          %238 = sbr.rel (%p235) target = $region36
        $region35: #{tpu_custom_call.1} parent=31 // pred_region
          %vm239 = vcmask 7168
          %240 = vst.msk [vmem:[#allocation2] sm:$0xff] %vm239, -inf
          %241 = vst.msk [vmem:[#allocation2 + $0x8] sm:$0xff] %vm239, -inf
          %242 = vst.msk [vmem:[#allocation3] sm:$0xff] %vm239, 0.0
          %243 = vst.msk [vmem:[#allocation3 + $0x8] sm:$0xff] %vm239, 0.0
        $region36: #{tpu_custom_call.1} parent=31 // pred_fallthru
          _
        %v244 = vld [vmem:[%s219] sm:$0xf]
        %v245 = vld [vmem:[%s219 + $0x4] sm:$0xf]
        %v246 = vld [vmem:[%s225] sm:$0xf]
        %v247 = vld [vmem:[%s225 + $0x4] sm:$0xf]
        %v248 = vld [vmem:[%s225 + $0x8] sm:$0xf]
        %v249 = vld [vmem:[%s225 + $0xc] sm:$0xf]
        %v250 = vld [vmem:[%s225 + $0x10] sm:$0xf]
        %v251 = vld [vmem:[%s225 + $0x14] sm:$0xf]
        %v252 = vld [vmem:[%s225 + $0x18] sm:$0xf]
        %v253 = vld [vmem:[%s225 + $0x1c] sm:$0xf]
        %v254 = vld [vmem:[%s225 + $0x20] sm:$0xf]
        %v255 = vld [vmem:[%s225 + $0x24] sm:$0xf]
        %v256 = vld [vmem:[%s225 + $0x28] sm:$0xf]
        %v257 = vld [vmem:[%s225 + $0x2c] sm:$0xf]
        %v258 = vld [vmem:[%s225 + $0x30] sm:$0xf]
        %v259 = vld [vmem:[%s225 + $0x34] sm:$0xf]
        %v260 = vld [vmem:[%s225 + $0x38] sm:$0xf]
        %v261 = vld [vmem:[%s225 + $0x3c] sm:$0xf]
        %v262 = vld [vmem:[%s229] sm:$0x1]
        %v264 = vlaneseq
        %v265 = vshrl.u32 %v264, 7
        %v266 = vsub.s32 0, %v265
        %v267 = vrot.slane %v262, %v266
        %v271 = vunpack.c.l.b16 %v244
        %v272 = vunpack.c.l.b16 %v245
        %v273 = vpack.c.b16 %v272, %v271
        %v290 = vunpack.c.l.b16 %v246
        %v291 = vunpack.c.l.b16 %v247
        %v292 = vunpack.c.l.b16 %v248
        %v293 = vunpack.c.l.b16 %v249
        %v294 = vunpack.c.l.b16 %v250
        %v295 = vunpack.c.l.b16 %v251
        %v296 = vunpack.c.l.b16 %v252
        %v297 = vunpack.c.l.b16 %v253
        %v298 = vunpack.c.l.b16 %v254
        %v299 = vunpack.c.l.b16 %v255
        %v300 = vunpack.c.l.b16 %v256
        %v301 = vunpack.c.l.b16 %v257
        %v302 = vunpack.c.l.b16 %v258
        %v303 = vunpack.c.l.b16 %v259
        %v304 = vunpack.c.l.b16 %v260
        %v305 = vunpack.c.l.b16 %v261
        %v306 = vpack.c.b16 %v291, %v290
        %v307 = vpack.c.b16 %v293, %v292
        %v308 = vpack.c.b16 %v295, %v294
        %v309 = vpack.c.b16 %v297, %v296
        %v310 = vpack.c.b16 %v299, %v298
        %v311 = vpack.c.b16 %v301, %v300
        %v312 = vpack.c.b16 %v303, %v302
        %v313 = vpack.c.b16 %v305, %v304
        %vm314 = vcmask 261120
        %v316 = vsel %vm314, %v273, 0
        %v319 = vsel %vm314, %v306, 0
        %v322 = vsel %vm314, %v307, 0
        %v325 = vsel %vm314, %v308, 0
        %v328 = vsel %vm314, %v309, 0
        %v331 = vsel %vm314, %v310, 0
        %v334 = vsel %vm314, %v311, 0
        %v337 = vsel %vm314, %v312, 0
        %v340 = vsel %vm314, %v313, 0
        %342 = vmatprep.subr.bf16.mxu0 0
        %343 = vmatpush1.bf16.xpose.msra.mxu0 %v340
        %344 = vmatprep.subr.bf16.mxu0 0
        %345 = vmatpush1.bf16.xpose.msra.mxu0 %v337
        %346 = vmatprep.subr.bf16.mxu0 0
        %347 = vmatpush1.bf16.xpose.msra.mxu0 %v334
        %348 = vmatprep.subr.bf16.mxu0 0
        %349 = vmatpush1.bf16.xpose.msra.mxu0 %v331
        %350 = vmatprep.subr.bf16.mxu0 0
        %351 = vmatpush1.bf16.xpose.msra.mxu0 %v328
        %352 = vmatprep.subr.bf16.mxu0 0
        %353 = vmatpush1.bf16.xpose.msra.mxu0 %v325
        %354 = vmatprep.subr.bf16.mxu0 0
        %355 = vmatpush1.bf16.xpose.msra.mxu0 %v322
        %356 = vmatprep.subr.bf16.mxu0 0
        %357 = vmatpush1.bf16.xpose.msra.mxu0 %v319
        %358 = vmatprep.subr.bf16.mxu0 0
        %359 = vmatpush2.bf16.xpose.msra.mxu0 0
        %360 = vmatprep.subr.bf16.mxu0 0
        %361 = vmatpush2.bf16.xpose.msra.mxu0 0
        %362 = vmatprep.subr.bf16.mxu0 0
        %363 = vmatpush2.bf16.xpose.msra.mxu0 0
        %364 = vmatprep.subr.bf16.mxu0 0
        %365 = vmatpush2.bf16.xpose.msra.mxu0 0
        %366 = vmatprep.subr.bf16.mxu0 0
        %367 = vmatpush2.bf16.xpose.msra.mxu0 0
        %368 = vmatprep.subr.bf16.mxu0 0
        %369 = vmatpush2.bf16.xpose.msra.mxu0 0
        %370 = vmatprep.subr.bf16.mxu0 0
        %371 = vmatpush2.bf16.xpose.msra.mxu0 0
        %372 = vmatprep.subr.bf16.mxu0 0
        %373 = vmatpush2.bf16.xpose.msra.mxu0 0
        %374 = vmatprep.mubr.bf16.mxu0 0
        %375 = vmatmul.mubr.bf16.gmra.mxu0 %v316
        %v376 = vpop.f32.mrf.mxu0
        %v377 = vadd.f32 %v267, %v376
        %v378 = vpop.f32.mrf.mxu0
        %v379 = vpop.f32.mrf.mxu0
        %v380 = vadd.f32 %v267, %v379
        %v381 = vpop.f32.mrf.mxu0
        %382 = vdwg.mxu0
        // Predicated region
        $region37: #{tpu_custom_call.1} parent=31 // pred_check
          %p383 = pneg %p233
        $region38: #{tpu_custom_call.1} parent=31 // pred_check_branch
          %385 = sbr.rel (%p383) target = $region40
        $region39: #{tpu_custom_call.1} parent=31 // pred_region
          %v386 = vld [vmem:[#allocation2] sm:$0xff]
          %v387 = vld [vmem:[#allocation2 + $0x8] sm:$0xff]
          %388 = vmax.xlane.f32.xlu0 %v377
          %v389 = vpop.xlane.xlu0 %388
          %390 = vmax.xlane.f32.xlu0 %v380
          %v391 = vpop.xlane.xlu0 %390
          %v392 = vmax.f32 %v386, %v389
          %v393 = vmax.f32 %v387, %v391
          %v394 = vsub.f32 %v386, %v392
          %v395 = vsub.f32 %v387, %v393
          %v396 = vmul.f32 %v394, 1.442695
          %v397 = vpow.pop %v396
          %v398 = vmul.f32 %v395, 1.442695
          %v399 = vpow.pop %v398
          %v400 = vld [vmem:[#allocation3] sm:$0xff]
          %v401 = vld [vmem:[#allocation3 + $0x8] sm:$0xff]
          %v402 = vmul.f32 %v397, %v400
          %v403 = vmul.f32 %v399, %v401
          %405 = vset.pattern.permute.xlu0 0
          %406 = vperm.xlu0 %405, %v392
          %v407 = vpop.permute.xlu0 %406
          %410 = vset.pattern.permute.xlu0 0
          %411 = vperm.xlu0 %410, %v393
          %v412 = vpop.permute.xlu0 %411
          %v414 = vsub.f32 %v377, %v407
          %v415 = vsub.f32 %v380, %v412
          %v416 = vmul.f32 %v414, 1.442695
          %v417 = vpow.pop %v416
          %v418 = vmul.f32 %v415, 1.442695
          %v419 = vpow.pop %v418
          %420 = vadd.xlane.f32.xlu0 %v417
          %v421 = vpop.xlane.xlu0 %420
          %422 = vadd.xlane.f32.xlu0 %v419
          %v423 = vpop.xlane.xlu0 %422
          %v424 = vadd.f32 %v402, %v421
          %v425 = vadd.f32 %v403, %v423
          %vm426 = vcmask 7168
          %427 = vst.msk [vmem:[#allocation3] sm:$0xff] %vm426, %v424
          %428 = vst.msk [vmem:[#allocation3 + $0x8] sm:$0xff] %vm426, %v425
          %429 = vst.msk [vmem:[#allocation2] sm:$0xff] %vm426, %v392
          %430 = vst.msk [vmem:[#allocation2 + $0x8] sm:$0xff] %vm426, %v393
          %p431 = scmp.eq.s32.totalorder %s24, 1
          // Predicated region
          $region41: #{tpu_custom_call.1} parent=39 // pred_check
            %p432 = pneg %p431
          $region42: #{tpu_custom_call.1} parent=39 // pred_check_branch
            %434 = sbr.rel (%p432) target = $region44
          $region43: #{tpu_custom_call.1} parent=39 // pred_region
            %v435 = vlog2.pop %v424
            %v436 = vmul.f32 %v435, 0.6931472
            %v437 = vlog2.pop %v425
            %v438 = vmul.f32 %v437, 0.6931472
            %v439 = vadd.f32 %v392, %v436
            %v440 = vadd.f32 %v393, %v438
            %441 = vst.msk [vmem:[#allocation2] sm:$0xff] %vm426, %v439
            %442 = vst.msk [vmem:[#allocation2 + $0x8] sm:$0xff] %vm426, %v440
          $region44: #{tpu_custom_call.1} parent=39 // pred_fallthru
            _
        $region40: #{tpu_custom_call.1} parent=31 // pred_fallthru
          _
        %p443 = scmp.eq.s32.totalorder %s23, 1
        // Predicated region
        $region45: #{tpu_custom_call.1} parent=31 // pred_check
          %p444 = pneg %p443
        $region46: #{tpu_custom_call.1} parent=31 // pred_check_branch
          %446 = sbr.rel (%p444) target = $region48
        $region47: #{tpu_custom_call.1} parent=31 // pred_region
          %v447 = vld [vmem:[#allocation2] sm:$0xff]
          %v448 = vld [vmem:[#allocation2 + $0x8] sm:$0xff]
          %450 = vset.pattern.permute.xlu0 0
          %451 = vperm.xlu0 %450, %v447
          %v452 = vpop.permute.xlu0 %451
          %455 = vset.pattern.permute.xlu0 0
          %456 = vperm.xlu0 %455, %v448
          %v457 = vpop.permute.xlu0 %456
          %v459 = vsub.f32 %v377, %v452
          %v460 = vsub.f32 %v380, %v457
          %461 = vst [vmem:[%s214] sm:$0xff] %v459
          %462 = vst [vmem:[%s214 + $0x8] sm:$0xff] %v460
        $region48: #{tpu_custom_call.1} parent=31 // pred_fallthru
          _
        %s463 = sand.u32 %s126, 1
        %s464 = scalar_lea.sflag [#allocation5], %s463
        %s465 = sand.u32 %s126, 1
        %s466 = smul.addr %s465, 16
        %s467 = scalar_lea.vmem [#allocation4], %s466
        // Predicated region
        $region49: #{tpu_custom_call.1} parent=31 // pred_check
          %p468 = pneg %p136
        $region50: #{tpu_custom_call.1} parent=31 // pred_check_branch
          %470 = sbr.rel (%p468) target = $region52
        $region51: #{tpu_custom_call.1} parent=31 // pred_region
          %s471 = smul.u32 %s24, %s23
          %s472 = smul.u32 2, %s22
          %s474 = ssub.s32 256, 256
          %475 = vsyncadd %s464, %s474
          %s476 = smul.addr %s472, 2
          %s477 = sadd.s32 %s471, %s476
          %s478 = smul.addr %s477, 128
          %s479 = scalar_lea.hbm %s3, %s478
          %s480 = sshll.u32 %s467, 4
          %s481 = int_to_ptr.vmem [resolvable:$true] %s480
          %486 = dma.vmem_to_hbm [thread:$0]  %s481, 256, %s479, %s464, 128, 256, 8
        $region52: #{tpu_custom_call.1} parent=31 // pred_fallthru
          _
      $region32: #{tpu_custom_call.1} parent=5 // pred_fallthru
        _
      %p487 = scmp.le.s32.totalorder 2, %s12
      // Predicated region
      $region53: #{tpu_custom_call.1} parent=5 // pred_check
        %p488 = pneg %p487
      $region54: #{tpu_custom_call.1} parent=5 // pred_check_branch
        %490 = sbr.rel (%p488) target = $region56
      $region55: #{tpu_custom_call.1} parent=5 // pred_region
        %s491 = ssub.s32 %s12, 2
        // Predicated region
        $region57: #{tpu_custom_call.1} parent=55 // pred_check
          %p492 = pneg %p142
        $region58: #{tpu_custom_call.1} parent=55 // pred_check_branch
          %494 = sbr.rel (%p492) target = $region60
        $region59: #{tpu_custom_call.1} parent=55 // pred_region
          %s495 = sand.u32 %s127, 1
          %s496 = scalar_lea.sflag [#allocation5], %s495
          %s497 = sand.u32 %s127, 1
          %s498 = smul.addr %s497, 16
          %s499 = scalar_lea.vmem [#allocation4], %s498
          %500 = dma.done %s496, 256
        $region60: #{tpu_custom_call.1} parent=55 // pred_fallthru
          _
      $region56: #{tpu_custom_call.1} parent=5 // pred_fallthru
        _
    $region6: #{tpu_custom_call.1} parent=1 // loop_footer
      %s16 = sadd.s32 1, %s12
    $region7: #{tpu_custom_call.1} parent=1 // loop_footer_branch
      %11 = sbr.rel target = $region3
    $region8: #{tpu_custom_call.1} parent=1 // loop_exit
      _
    %501 = vsyncpa [#allocation5], 1
    %s502 = scalar_lea.sflag [#allocation5], 1
    %503 = vsyncpa %s502, 1

</llo_original>
